<compile_context>
chip_gen: v7x
topology: tpu7x:2x2x1
jax: 0.10.0
libtpu: 0.0.40
codegen_flags: <defaults>
</compile_context>

<pallas_src>
import functools

import numpy as np
import jax
import jax.numpy as jnp
from jax.experimental import pallas as pl
from jax.experimental.pallas import tpu as pltpu


def _round_up(v, m):
    return (v + m - 1) // m * m


@functools.lru_cache(maxsize=None)
def _roll_is_numpy_convention():
    """One-time probe of pltpu.roll's sign convention on this backend.

    Returns True iff pltpu.roll(x, shift=1, axis=1) behaves like np.roll (element i
    moves to i+1).  The 3x3-conv tap shifts below are written for the np.roll
    convention; if the lowering uses the opposite sign we simply negate the shifts.
    """
    def k(x_ref, o_ref):
        o_ref[...] = pltpu.roll(x_ref[...], shift=1, axis=1)

    x = jnp.broadcast_to(jnp.arange(128, dtype=jnp.float32), (8, 128))
    y = pl.pallas_call(k, out_shape=jax.ShapeDtypeStruct((8, 128), jnp.float32))(x)
    return bool(np.asarray(y)[0, 0] == 127.0)


def _bottleneck_kernel(x_ref, w1_ref, w2_ref, w3_ref, t_ref, m_ref, o_ref,
                       *, W, LB, C1P, C2P, CoutP, np_roll):
    # x_ref / o_ref: (CoutP, LB) with LB = images_per_block * H*W (image-major lanes).
    x = x_ref[...]                                               # (CoutP, LB) f32

    # ---- conv1 (1x1, BN folded) + relu : bf16 MXU operands, f32 accumulate ----
    h1 = jnp.dot(w1_ref[...], x.astype(jnp.bfloat16),
                 preferred_element_type=jnp.float32)
    h1 = jnp.maximum(h1 + t_ref[0:C1P, :], 0.0)                  # (C1P, LB) f32

    # ---- conv2 (3x3, pad=1, stride=1) as ONE fat matmul over 9 rolled taps ----
    # Each non-centre tap is an in-register lane rotation of h1 (XLU slot, no VMEM
    # round trip) multiplied by a precomputed validity mask that zeroes image-border
    # lanes and any cross-image / circular-wrap lanes.
    pieces = []
    m_idx = 0
    for ky in range(3):
        for kx in range(3):
            if ky == 1 and kx == 1:
                pieces.append(h1)                                # centre tap, always valid
                continue
            off = (ky - 1) * W + (kx - 1)                        # flat source offset
            shift = (-off if np_roll else off) % LB
            tap = pltpu.roll(h1, shift=shift, axis=1)
            tap = tap * m_ref[m_idx:m_idx + 1, :]
            m_idx += 1
            pieces.append(tap)
    patch = jnp.concatenate(pieces, axis=0)                      # (9*C1P, LB), vreg-aligned

    h2 = jnp.dot(w2_ref[...], patch.astype(jnp.bfloat16),
                 preferred_element_type=jnp.float32)
    h2 = jnp.maximum(h2 + t_ref[C1P:C1P + C2P, :], 0.0)          # (C2P, LB) f32

    # ---- conv3 (1x1, BN folded, rows pre-padded to CoutP) ----
    h3 = jnp.dot(w3_ref[...], h2.astype(jnp.bfloat16),
                 preferred_element_type=jnp.float32)
    h3 = h3 + t_ref[C1P + C2P:C1P + C2P + CoutP, :]

    # ---- residual (identity channels zero-padded in the wrapper) + relu ----
    o_ref[...] = jnp.maximum(h3 + x, 0.0)


def _pick_grid(n, hw, max_lanes=8192):
    """Fewest grid steps whose activation block stays small in VMEM; keep the step
    count even when possible so both TensorCores get work on megacore parts."""
    g_sel = n
    for g in range(1, n + 1):
        if n % g == 0 and (n // g) * hw <= max_lanes:
            g_sel = g
            break
    if g_sel == 1 and n % 2 == 0:
        g_sel = 2
    return g_sel


def pruned_bottleneck_pallas(x_nchw, params):
    """x_nchw: (N, Cin, H, W) float32.
    params: PyTorch-layout tensors + folded BN affine:
      (w1 (c1,Cin,1,1), s1, t1, w2 (c2,c1,3,3), b2, s2, t2, w3 (c3,c2,1,1), s3, t3)
    Returns (N, Cout, H, W) with Cout = max(Cin, c3)."""
    w1, s1, t1, w2, b2, s2, t2, w3, s3, t3 = params
    N, Cin, H, W = x_nchw.shape
    c1, c2, c3 = w1.shape[0], w2.shape[0], w3.shape[0]
    HW = H * W
    Cout = max(Cin, c3)
    CoutP = _round_up(Cout, 8)
    C1P = _round_up(c1, 8)
    C2P = _round_up(c2, 8)

    G = _pick_grid(N, HW)
    NB = N // G                    # whole images per grid step
    LB = NB * HW                   # lanes per block (multiple of 128 when HW is)

    # ---- fold BN scale into weights, bias into shift; zero-pad channel dims ----
    w1k = w1[:, :, 0, 0] * s1[:, None]                                   # (c1, Cin)
    w1k = jnp.pad(w1k, ((0, C1P - c1), (0, CoutP - Cin))).astype(jnp.bfloat16)
    t1k = jnp.pad(t1, (0, C1P - c1))

    w2k = jnp.transpose(w2, (0, 2, 3, 1))                                # (c2, 3, 3, c1)
    w2k = jnp.pad(w2k, ((0, 0), (0, 0), (0, 0), (0, C1P - c1)))
    w2k = w2k.reshape(c2, 9 * C1P) * s2[:, None]
    w2k = jnp.pad(w2k, ((0, C2P - c2), (0, 0))).astype(jnp.bfloat16)     # (C2P, 9*C1P)
    t2k = jnp.pad(b2 * s2 + t2, (0, C2P - c2))

    w3k = w3[:, :, 0, 0] * s3[:, None]                                   # (c3, c2)
    w3k = jnp.pad(w3k, ((0, CoutP - c3), (0, C2P - c2))).astype(jnp.bfloat16)
    t3k = jnp.pad(t3, (0, CoutP - c3))

    tcat = jnp.concatenate([t1k, t2k, t3k]).astype(jnp.float32)
    tcat = tcat.reshape(C1P + C2P + CoutP, 1)

    # ---- per-tap validity masks (dy AND dx; also kill cross-image lane wraps) ----
    ys, xs = np.meshgrid(np.arange(H), np.arange(W), indexing="ij")
    rows = []
    for ky in range(3):
        for kx in range(3):
            if ky == 1 and kx == 1:
                continue
            dy, dx = ky - 1, kx - 1
            valid = ((ys + dy >= 0) & (ys + dy < H) &
                     (xs + dx >= 0) & (xs + dx < W))
            rows.append(valid.astype(np.float32).reshape(HW))
    masks = jnp.asarray(np.tile(np.stack(rows, 0), (1, NB)))             # (8, LB)

    # ---- batch+spatial in lanes; zero-pad channels so the residual identity is x ----
    xk = x_nchw.reshape(N, Cin, HW)
    xk = jnp.pad(xk, ((0, 0), (0, CoutP - Cin), (0, 0)))                 # (N, CoutP, HW)
    xk = jnp.transpose(xk, (1, 0, 2)).reshape(CoutP, N * HW)             # (CoutP, N*HW)

    kernel = functools.partial(
        _bottleneck_kernel, W=W, LB=LB, C1P=C1P, C2P=C2P, CoutP=CoutP,
        np_roll=_roll_is_numpy_convention())

    flops = 2 * N * HW * (CoutP * C1P + 9 * C1P * C2P + C2P * CoutP)
    bytes_accessed = (4 * 2 * CoutP * N * HW
                      + 2 * (C1P * CoutP + C2P * 9 * C1P + CoutP * C2P)
                      + 4 * (C1P + C2P + CoutP) + 4 * 8 * LB)

    const = lambda g: (0, 0)
    out = pl.pallas_call(
        kernel,
        out_shape=jax.ShapeDtypeStruct((CoutP, N * HW), jnp.float32),
        grid=(G,),
        in_specs=[
            pl.BlockSpec((CoutP, LB), lambda g: (0, g)),
            pl.BlockSpec((C1P, CoutP), const),
            pl.BlockSpec((C2P, 9 * C1P), const),
            pl.BlockSpec((CoutP, C2P), const),
            pl.BlockSpec((C1P + C2P + CoutP, 1), const),
            pl.BlockSpec((8, LB), const),
        ],
        out_specs=pl.BlockSpec((CoutP, LB), lambda g: (0, g)),
        compiler_params=pltpu.CompilerParams(
            dimension_semantics=("parallel",)),
        cost_estimate=pl.CostEstimate(
            flops=flops, transcendentals=0, bytes_accessed=bytes_accessed),
    )(xk, w1k, w2k, w3k, tcat, masks)

    out = out.reshape(CoutP, N, HW).transpose(1, 0, 2)                   # (N, CoutP, HW)
    return out[:, :Cout, :].reshape(N, Cout, H, W)


# ---------------- pure-JAX reference (NCHW, matches the PyTorch module) ----------------
def _conv2d_nchw(x, w, padding=0):
    return jax.lax.conv_general_dilated(
        x, w, window_strides=(1, 1),
        padding=[(padding, padding), (padding, padding)],
        dimension_numbers=("NCHW", "OIHW", "NCHW"))


def _bn(x, scale, shift):
    return x * scale[None, :, None, None] + shift[None, :, None, None]


def reference_nchw(x, pt_params):
    w1, s1, t1, w2, b2, s2, t2, w3, s3, t3 = pt_params
    out = _conv2d_nchw(x, w1)                       # conv1 1x1, no bias
    out = jnp.maximum(_bn(out, s1, t1), 0.0)
    out = _conv2d_nchw(out, w2, padding=1) + b2[None, :, None, None]
    out = jnp.maximum(_bn(out, s2, t2), 0.0)
    out = _conv2d_nchw(out, w3)
    out = _bn(out, s3, t3)
    identity = x
    padd = identity.shape[1] - out.shape[1]
    if padd < 0:
        identity = jnp.pad(identity, ((0, 0), (0, -padd), (0, 0), (0, 0)))
    elif padd > 0:
        out = jnp.pad(out, ((0, 0), (0, padd), (0, 0), (0, 0)))
    return jnp.maximum(out + identity, 0.0)


def _fold_bn(gamma, beta, mean, var, eps=1e-5):
    s = gamma * jax.lax.rsqrt(var + eps)
    t = beta - mean * s
    return s, t


if __name__ == "__main__":
    # ---- module config (small, consistent with the PyTorch module) ----
    inplanes, planes = 16, 4
    groups, base_width, expansion = 1, 64, 4
    width = int(planes * (base_width / 64.0)) * groups               # = 4
    prune_mask = np.array([1] * width + [1] * width + [1] * 12 + [0] * 4, dtype=np.int32)
    c1 = int(np.sum(prune_mask[:width]))                             # 4
    c2 = int(np.sum(prune_mask[width:2 * width]))                    # 4
    c3 = int(np.sum(prune_mask[2 * width:2 * width + planes * expansion]))  # 12

    N, H, W = 4, 16, 16   # N=4 -> 2 grid steps of 2 images each (exercises batch folding)
    key = jax.random.PRNGKey(0)
    keys = jax.random.split(key, 16)

    # ---- deterministic parameter init (PyTorch OIHW shapes) ----
    w1_pt = jax.random.normal(keys[0], (c1, inplanes, 1, 1), jnp.float32) * 0.1
    g1 = 1.0 + 0.1 * jax.random.normal(keys[1], (c1,), jnp.float32)
    b1 = 0.1 * jax.random.normal(keys[2], (c1,), jnp.float32)
    m1 = 0.1 * jax.random.normal(keys[3], (c1,), jnp.float32)
    v1 = jnp.abs(jax.random.normal(keys[4], (c1,), jnp.float32)) + 0.5

    w2_pt = jax.random.normal(keys[5], (c2, c1, 3, 3), jnp.float32) * 0.1
    bias2 = 0.1 * jax.random.normal(keys[6], (c2,), jnp.float32)
    g2 = 1.0 + 0.1 * jax.random.normal(keys[7], (c2,), jnp.float32)
    b2_ = 0.1 * jax.random.normal(keys[8], (c2,), jnp.float32)
    m2 = 0.1 * jax.random.normal(keys[9], (c2,), jnp.float32)
    v2 = jnp.abs(jax.random.normal(keys[10], (c2,), jnp.float32)) + 0.5

    w3_pt = jax.random.normal(keys[11], (c3, c2, 1, 1), jnp.float32) * 0.1
    g3 = 1.0 + 0.1 * jax.random.normal(keys[12], (c3,), jnp.float32)
    b3 = 0.1 * jax.random.normal(keys[13], (c3,), jnp.float32)
    m3 = 0.1 * jax.random.normal(keys[14], (c3,), jnp.float32)
    v3 = jnp.abs(jax.random.normal(keys[15], (c3,), jnp.float32)) + 0.5

    s1, t1 = _fold_bn(g1, b1, m1, v1)
    s2, t2 = _fold_bn(g2, b2_, m2, v2)
    s3, t3 = _fold_bn(g3, b3, m3, v3)

    # ---- input (NCHW, same as the PyTorch module) ----
    x_nchw = jax.random.normal(jax.random.PRNGKey(42), (N, inplanes, H, W), jnp.float32)

    pt_params = (w1_pt, s1, t1, w2_pt, bias2, s2, t2, w3_pt, s3, t3)

    out = pruned_bottleneck_pallas(x_nchw, pt_params)
    out = jax.block_until_ready(out)

    ref = jax.block_until_ready(reference_nchw(x_nchw, pt_params))
    # bf16 MXU operands (f32 accumulate) -> looser tolerance than the all-f32 version.
    np.testing.assert_allclose(np.asarray(out), np.asarray(ref), rtol=2e-2, atol=2e-2)

    print("KERNEL_OK")
</pallas_src>

<mosaic_0001>
module attributes {stable_mosaic.version = 11 : i64} {
  func.func @k(%arg0: memref<8x128xf32, #tpu.memory_space<vmem>>, %arg1: memref<8x128xf32, #tpu.memory_space<vmem>>) attributes {dimension_semantics = [], scalar_prefetch = 0 : i64, scratch_operands = 0 : i64, tpu.core_type = #tpu.core_type<tc>} {
    %c0 = arith.constant 0 : index
    %c0_0 = arith.constant 0 : index
    %0 = vector.load %arg0[%c0, %c0_0] : memref<8x128xf32, #tpu.memory_space<vmem>>, vector<8x128xf32>
    %c1_i32 = arith.constant 1 : i32
    %1 = tpu.dynamic_rotate %0 by %c1_i32 dim 1 : vector<8x128xf32>, i32 -> vector<8x128xf32>
    %c0_1 = arith.constant 0 : index
    %c0_2 = arith.constant 0 : index
    %2 = vector.load %arg1[%c0_1, %c0_2] : memref<8x128xf32, #tpu.memory_space<vmem>>, vector<8x128xf32>
    tpu.vector_store %arg1[%c0_1, %c0_2], %1 {strides = array<i32>} : memref<8x128xf32, #tpu.memory_space<vmem>>, vector<8x128xf32>,
    return
  }
}

</mosaic_0001>

<llo_original>
// kernel: tpu_custom_call.1
$region0: #{tpu_custom_call.1}
  #allocation0 [shape = 'u32[]', space=smem, size = 0x4, offset = 0x4, fixed_abs, tag = 'smem constant byte address 0x4 - core index']
  #allocation1 [shape = 'u32[144,128]{1,0:T(1,128)}', space=vmem, size = 0x12000, scoped, tag = 'internal scratch']
  %s0 = inlined_call_operand.hbm [shape: f32[8,128], index: 0, kind: input, shape index: {}]
  %s1 = inlined_call_operand.hbm [shape: f32[8,128], index: 1, kind: output, shape index: {}]
  %s2 = sld [smem:[#allocation0]]
  $region18: #{tpu_custom_call.1} parent=0
    _
  %s4 = ssub.s32 1, %s2
  %s5 = scalar_select 0, %s4, %s2
  $region1: #{tpu_custom_call.1} parent=0
    #allocation2 [shape = 'u8[4096]{0}', space=vmem, size = 0x1000, scoped, tag = 'input window, operand 0, single buffered']
    #allocation3 [shape = 's32[1]{0}', space=sflag, size = 0x4, scoped, tag = 'scoped memory for tpu_custom_call.1']
    #allocation4 [shape = 's32[1]{0}', space=sflag, size = 0x4, scoped, tag = 'scoped memory for tpu_custom_call.1']
    #allocation5 [shape = 'u8[4096]{0}', space=vmem, size = 0x1000, scoped, tag = 'output window, operand 0, single buffered']
    %6 = vsyncpa [#allocation3], 0
    %7 = vsyncpa [#allocation4], 0
    // Predicated region
    $region2: #{tpu_custom_call.1} parent=1 // pred_check
      _
    $region3: #{tpu_custom_call.1} parent=1 // pred_check_branch
      %9 = sbr.rel (0) target = $region5
    $region4: #{tpu_custom_call.1} parent=1 // pred_region
      %s11 = ssub.s32 128, 128
      %12 = vsyncadd [#allocation3], %s11
      %s14 = sshll.u32 [#allocation2], 4
      %s15 = int_to_ptr.vmem [resolvable:$true] %s14
      %17 = dma.hbm_to_vmem [thread:$0]  %s0, 128, %s15, [#allocation3]
    $region5: #{tpu_custom_call.1} parent=1 // pred_fallthru
      _
    // Predicated region
    $region6: #{tpu_custom_call.1} parent=1 // pred_check
      _
    $region7: #{tpu_custom_call.1} parent=1 // pred_check_branch
      %19 = sbr.rel (0) target = $region9
    $region8: #{tpu_custom_call.1} parent=1 // pred_region
      %20 = dma.done [#allocation3], 128
    $region9: #{tpu_custom_call.1} parent=1 // pred_fallthru
      _
    %v21 = vld [vmem:[#allocation2] sm:$0xff]
    %22 = vrot.lane.b32.xlu0 %v21, 1
    %v23 = vpop.permute.xlu0 %22
    %24 = vst [vmem:[#allocation5] sm:$0xff] %v23
    // Predicated region
    $region10: #{tpu_custom_call.1} parent=1 // pred_check
      _
    $region11: #{tpu_custom_call.1} parent=1 // pred_check_branch
      %26 = sbr.rel (0) target = $region13
    $region12: #{tpu_custom_call.1} parent=1 // pred_region
      %s28 = ssub.s32 128, 128
      %29 = vsyncadd [#allocation4], %s28
      %s31 = sshll.u32 [#allocation5], 4
      %s32 = int_to_ptr.vmem [resolvable:$true] %s31
      %34 = dma.vmem_to_hbm [thread:$0]  %s32, 128, %s1, [#allocation4]
    $region13: #{tpu_custom_call.1} parent=1 // pred_fallthru
      _
    // Predicated region
    $region14: #{tpu_custom_call.1} parent=1 // pred_check
      _
    $region15: #{tpu_custom_call.1} parent=1 // pred_check_branch
      %36 = sbr.rel (0) target = $region17
    $region16: #{tpu_custom_call.1} parent=1 // pred_region
      %37 = dma.done [#allocation4], 128
    $region17: #{tpu_custom_call.1} parent=1 // pred_fallthru
      _
    %38 = vsyncpa [#allocation3], 1
    %39 = vsyncpa [#allocation4], 1

</llo_original>
